<compile_context>
chip_gen: v5e
topology: v5e:2x2
jax: 0.10.0
libtpu: 0.0.40
codegen_flags: <defaults>
</compile_context>

<pallas_src>
import functools

import jax
import jax.numpy as jnp
from jax import lax
from jax.experimental import pallas as pl
from jax.experimental.pallas import tpu as pltpu

LANE = 128


def _round_up(x, m):
    return (x + m - 1) // m * m


def mlp_kernel(x_ref,
               w1_ref, b1_ref,
               w2_ref, b2_ref,
               w3_ref, b3_ref,
               w4_ref, b4_ref,
               w5_ref, b5_ref,
               o_ref):
    """One batch tile of the fused 5-layer MLP.

    Weights are VMEM-resident (constant index_map). Activations enter the MXU
    as bf16; accumulation, bias-add and ReLU are f32.
    """
    h = x_ref[...]                                                        # (TB, in) bf16
    h = jnp.dot(h, w1_ref[...], preferred_element_type=jnp.float32) + b1_ref[...]
    h = jnp.maximum(h, 0.0)

    h = jnp.dot(h.astype(jnp.bfloat16), w2_ref[...],
                preferred_element_type=jnp.float32) + b2_ref[...]
    h = jnp.maximum(h, 0.0)

    h = jnp.dot(h.astype(jnp.bfloat16), w3_ref[...],
                preferred_element_type=jnp.float32) + b3_ref[...]
    h = jnp.maximum(h, 0.0)

    h = jnp.dot(h.astype(jnp.bfloat16), w4_ref[...],
                preferred_element_type=jnp.float32) + b4_ref[...]
    h = jnp.maximum(h, 0.0)

    q = jnp.dot(h.astype(jnp.bfloat16), w5_ref[...],
                preferred_element_type=jnp.float32) + b5_ref[...]
    o_ref[...] = q.astype(o_ref.dtype)                                    # lane-dense f32 store


def _prepare_params(params):
    """Cast weights to bf16 (MXU-native), keep biases f32, and zero-pad the
    narrow layers (64-wide hidden, nb_actions output) up to 128-lane multiples
    so every matmul output is lane-dense. Zero padding is exact: padded hidden
    channels stay 0 through ReLU and meet zero weight rows in the next layer."""
    prepared = []
    n_layers = len(params) // 2
    for li in range(n_layers):
        w = params[2 * li].astype(jnp.float32)
        b = params[2 * li + 1].astype(jnp.float32).reshape(1, -1)
        in_f, out_f = w.shape
        in_p = in_f if li == 0 else _round_up(in_f, LANE)   # matches previous layer's padded out
        out_p = _round_up(out_f, LANE)
        w = jnp.pad(w, ((0, in_p - in_f), (0, out_p - out_f)))
        b = jnp.pad(b, ((0, 0), (0, out_p - out_f)))
        prepared.append(w.astype(jnp.bfloat16))             # weights: bf16
        prepared.append(b)                                  # biases:  f32
    return prepared


@functools.partial(jax.jit, static_argnames=("block_b",))
def neural_network_forward(state, params, *, block_b=512):
    """state: (B, input_size) f32. params: flat list [w1, b1, ..., w5, b5]
    with weights stored as (in_features, out_features)."""
    batch, in_features = state.shape
    nb_actions = params[-1].shape[-1]

    prepared = _prepare_params(params)
    out_pad = prepared[-1].shape[-1]                        # nb_actions rounded up to 128

    # Batch tiling: grid over rows; pad batch up to a multiple of the tile.
    tb = min(block_b, _round_up(batch, 8))
    bp = _round_up(batch, tb)
    x = state.astype(jnp.bfloat16)                          # halve activation DMA bytes
    if bp != batch:
        x = jnp.pad(x, ((0, bp - batch), (0, 0)))

    grid = (bp // tb,)
    x_spec = pl.BlockSpec((tb, in_features), lambda i: (i, 0))
    param_specs = [pl.BlockSpec(p.shape, lambda i: (0, 0)) for p in prepared]  # resident
    out_spec = pl.BlockSpec((tb, out_pad), lambda i: (i, 0))

    n_layers = len(prepared) // 2
    flops = 2 * bp * sum(prepared[2 * l].shape[0] * prepared[2 * l].shape[1]
                         for l in range(n_layers))
    bytes_accessed = (x.size * x.dtype.itemsize
                      + bp * out_pad * 4
                      + sum(p.size * p.dtype.itemsize for p in prepared))

    out = pl.pallas_call(
        mlp_kernel,
        out_shape=jax.ShapeDtypeStruct((bp, out_pad), jnp.float32),
        grid=grid,
        in_specs=[x_spec] + param_specs,
        out_specs=out_spec,
        compiler_params=pltpu.CompilerParams(
            dimension_semantics=("parallel",),              # megacore on v7x
            vmem_limit_bytes=16 << 20,                      # fits v7x 64 MiB VMEM easily
        ),
        cost_estimate=pl.CostEstimate(flops=flops, transcendentals=0,
                                      bytes_accessed=bytes_accessed),
    )(x, *prepared)

    return out[:batch, :nb_actions]


def init_params(key, input_size, nb_actions):
    """Deterministic init mirroring PyTorch nn.Linear default U(-1/sqrt(fan_in), ...)."""
    dims = [input_size, 256, 256, 128, 64, nb_actions]
    params = []
    for i in range(len(dims) - 1):
        fan_in, fan_out = dims[i], dims[i + 1]
        key, kw, kb = jax.random.split(key, 3)
        bound = 1.0 / jnp.sqrt(jnp.float32(fan_in))
        w = jax.random.uniform(kw, (fan_in, fan_out), jnp.float32, -bound, bound)
        b = jax.random.uniform(kb, (1, fan_out), jnp.float32, -bound, bound)
        params.extend([w, b])
    return params


def reference_forward(state, params):
    """Pure-JAX reference with the same bf16-operand / f32-accumulate numerics."""
    h = state.astype(jnp.bfloat16).astype(jnp.float32)
    n_layers = len(params) // 2
    for li in range(n_layers):
        w = params[2 * li].astype(jnp.bfloat16).astype(jnp.float32)
        b = params[2 * li + 1].astype(jnp.float32).reshape(1, -1)
        h = jnp.dot(h, w, precision=lax.Precision.HIGHEST) + b
        if li < n_layers - 1:
            h = jnp.maximum(h, 0.0).astype(jnp.bfloat16).astype(jnp.float32)
    return h


if __name__ == "__main__":
    key = jax.random.PRNGKey(0)
    batch = 8
    input_size = 16
    nb_actions = 4

    key, k_state = jax.random.split(key)
    state = jax.random.normal(k_state, (batch, input_size), jnp.float32)
    params = init_params(key, input_size, nb_actions)

    q_values = neural_network_forward(state, params)
    jax.block_until_ready(q_values)

    q_ref = reference_forward(state, params)
    assert q_values.shape == (batch, nb_actions)
    assert jnp.allclose(q_values, q_ref, atol=2e-2, rtol=2e-2), (
        jnp.max(jnp.abs(q_values - q_ref)))

    print("KERNEL_OK")
</pallas_src>

<mosaic_0001>
module attributes {stable_mosaic.version = 11 : i64} {
  func.func @mlp_kernel(%arg0: i32, %arg1: memref<8x16xbf16, #tpu.memory_space<vmem>>, %arg2: memref<16x256xbf16, #tpu.memory_space<vmem>>, %arg3: memref<1x256xf32, #tpu.memory_space<vmem>>, %arg4: memref<256x256xbf16, #tpu.memory_space<vmem>>, %arg5: memref<1x256xf32, #tpu.memory_space<vmem>>, %arg6: memref<256x128xbf16, #tpu.memory_space<vmem>>, %arg7: memref<1x128xf32, #tpu.memory_space<vmem>>, %arg8: memref<128x128xbf16, #tpu.memory_space<vmem>>, %arg9: memref<1x128xf32, #tpu.memory_space<vmem>>, %arg10: memref<128x128xbf16, #tpu.memory_space<vmem>>, %arg11: memref<1x128xf32, #tpu.memory_space<vmem>>, %arg12: memref<8x128xf32, #tpu.memory_space<vmem>>) attributes {dimension_semantics = [#tpu.dimension_semantics<parallel>], iteration_bounds = array<i64: 1>, scalar_prefetch = 0 : i64, scratch_operands = 0 : i64, tpu.core_type = #tpu.core_type<tc>, window_params = [{transform_indices = @transform_0, window_bounds = array<i64: 8, 16>}, {pipeline_mode = #tpu.pipeline_mode<synchronous>, transform_indices = @transform_1, window_bounds = array<i64: 16, 256>}, {pipeline_mode = #tpu.pipeline_mode<synchronous>, transform_indices = @transform_2, window_bounds = array<i64: 1, 256>}, {pipeline_mode = #tpu.pipeline_mode<synchronous>, transform_indices = @transform_3, window_bounds = array<i64: 256, 256>}, {pipeline_mode = #tpu.pipeline_mode<synchronous>, transform_indices = @transform_4, window_bounds = array<i64: 1, 256>}, {pipeline_mode = #tpu.pipeline_mode<synchronous>, transform_indices = @transform_5, window_bounds = array<i64: 256, 128>}, {pipeline_mode = #tpu.pipeline_mode<synchronous>, transform_indices = @transform_6, window_bounds = array<i64: 1, 128>}, {pipeline_mode = #tpu.pipeline_mode<synchronous>, transform_indices = @transform_7, window_bounds = array<i64: 128, 128>}, {pipeline_mode = #tpu.pipeline_mode<synchronous>, transform_indices = @transform_8, window_bounds = array<i64: 1, 128>}, {pipeline_mode = #tpu.pipeline_mode<synchronous>, transform_indices = @transform_9, window_bounds = array<i64: 128, 128>}, {pipeline_mode = #tpu.pipeline_mode<synchronous>, transform_indices = @transform_10, window_bounds = array<i64: 1, 128>}, {transform_indices = @transform_11, window_bounds = array<i64: 8, 128>}]} {
    %c0 = arith.constant 0 : index
    %c0_0 = arith.constant 0 : index
    %0 = vector.load %arg1[%c0, %c0_0] : memref<8x16xbf16, #tpu.memory_space<vmem>>, vector<8x16xbf16>
    %c0_1 = arith.constant 0 : index
    %c0_2 = arith.constant 0 : index
    %1 = vector.load %arg2[%c0_1, %c0_2] : memref<16x256xbf16, #tpu.memory_space<vmem>>, vector<16x256xbf16>
    %cst = arith.constant dense<0.000000e+00> : vector<8x256xf32>
    %2 = tpu.matmul %0, %1, %cst {dimension_numbers = #tpu.dot_dimension_numbers<[1], [0], [0], [1], [0, 0, 1, 1], [], []>} : vector<8x16xbf16>, vector<16x256xbf16>, vector<8x256xf32> -> vector<8x256xf32>
    %c0_3 = arith.constant 0 : index
    %c0_4 = arith.constant 0 : index
    %3 = vector.load %arg3[%c0_3, %c0_4] : memref<1x256xf32, #tpu.memory_space<vmem>>, vector<1x256xf32>
    %4 = vector.broadcast %3 : vector<1x256xf32> to vector<8x256xf32>
    %5 = arith.addf %2, %4 : vector<8x256xf32>
    %cst_5 = arith.constant 0.000000e+00 : f32
    %6 = vector.broadcast %cst_5 : f32 to vector<8x256xf32>
    %7 = arith.maximumf %5, %6 : vector<8x256xf32>
    %8 = arith.truncf %7 : vector<8x256xf32> to vector<8x256xbf16>
    %c0_6 = arith.constant 0 : index
    %c0_7 = arith.constant 0 : index
    %9 = vector.load %arg4[%c0_6, %c0_7] : memref<256x256xbf16, #tpu.memory_space<vmem>>, vector<256x256xbf16>
    %cst_8 = arith.constant dense<0.000000e+00> : vector<8x256xf32>
    %10 = tpu.matmul %8, %9, %cst_8 {dimension_numbers = #tpu.dot_dimension_numbers<[1], [0], [0], [1], [0, 0, 1, 1], [], []>} : vector<8x256xbf16>, vector<256x256xbf16>, vector<8x256xf32> -> vector<8x256xf32>
    %c0_9 = arith.constant 0 : index
    %c0_10 = arith.constant 0 : index
    %11 = vector.load %arg5[%c0_9, %c0_10] : memref<1x256xf32, #tpu.memory_space<vmem>>, vector<1x256xf32>
    %12 = vector.broadcast %11 : vector<1x256xf32> to vector<8x256xf32>
    %13 = arith.addf %10, %12 : vector<8x256xf32>
    %cst_11 = arith.constant 0.000000e+00 : f32
    %14 = vector.broadcast %cst_11 : f32 to vector<8x256xf32>
    %15 = arith.maximumf %13, %14 : vector<8x256xf32>
    %16 = arith.truncf %15 : vector<8x256xf32> to vector<8x256xbf16>
    %c0_12 = arith.constant 0 : index
    %c0_13 = arith.constant 0 : index
    %17 = vector.load %arg6[%c0_12, %c0_13] : memref<256x128xbf16, #tpu.memory_space<vmem>>, vector<256x128xbf16>
    %cst_14 = arith.constant dense<0.000000e+00> : vector<8x128xf32>
    %18 = tpu.matmul %16, %17, %cst_14 {dimension_numbers = #tpu.dot_dimension_numbers<[1], [0], [0], [1], [0, 0, 1, 1], [], []>} : vector<8x256xbf16>, vector<256x128xbf16>, vector<8x128xf32> -> vector<8x128xf32>
    %c0_15 = arith.constant 0 : index
    %c0_16 = arith.constant 0 : index
    %19 = vector.load %arg7[%c0_15, %c0_16] : memref<1x128xf32, #tpu.memory_space<vmem>>, vector<1x128xf32>
    %20 = vector.broadcast %19 : vector<1x128xf32> to vector<8x128xf32>
    %21 = arith.addf %18, %20 : vector<8x128xf32>
    %cst_17 = arith.constant 0.000000e+00 : f32
    %22 = vector.broadcast %cst_17 : f32 to vector<8x128xf32>
    %23 = arith.maximumf %21, %22 : vector<8x128xf32>
    %24 = arith.truncf %23 : vector<8x128xf32> to vector<8x128xbf16>
    %c0_18 = arith.constant 0 : index
    %c0_19 = arith.constant 0 : index
    %25 = vector.load %arg8[%c0_18, %c0_19] : memref<128x128xbf16, #tpu.memory_space<vmem>>, vector<128x128xbf16>
    %cst_20 = arith.constant dense<0.000000e+00> : vector<8x128xf32>
    %26 = tpu.matmul %24, %25, %cst_20 {dimension_numbers = #tpu.dot_dimension_numbers<[1], [0], [0], [1], [0, 0, 1, 1], [], []>} : vector<8x128xbf16>, vector<128x128xbf16>, vector<8x128xf32> -> vector<8x128xf32>
    %c0_21 = arith.constant 0 : index
    %c0_22 = arith.constant 0 : index
    %27 = vector.load %arg9[%c0_21, %c0_22] : memref<1x128xf32, #tpu.memory_space<vmem>>, vector<1x128xf32>
    %28 = vector.broadcast %27 : vector<1x128xf32> to vector<8x128xf32>
    %29 = arith.addf %26, %28 : vector<8x128xf32>
    %cst_23 = arith.constant 0.000000e+00 : f32
    %30 = vector.broadcast %cst_23 : f32 to vector<8x128xf32>
    %31 = arith.maximumf %29, %30 : vector<8x128xf32>
    %32 = arith.truncf %31 : vector<8x128xf32> to vector<8x128xbf16>
    %c0_24 = arith.constant 0 : index
    %c0_25 = arith.constant 0 : index
    %33 = vector.load %arg10[%c0_24, %c0_25] : memref<128x128xbf16, #tpu.memory_space<vmem>>, vector<128x128xbf16>
    %cst_26 = arith.constant dense<0.000000e+00> : vector<8x128xf32>
    %34 = tpu.matmul %32, %33, %cst_26 {dimension_numbers = #tpu.dot_dimension_numbers<[1], [0], [0], [1], [0, 0, 1, 1], [], []>} : vector<8x128xbf16>, vector<128x128xbf16>, vector<8x128xf32> -> vector<8x128xf32>
    %c0_27 = arith.constant 0 : index
    %c0_28 = arith.constant 0 : index
    %35 = vector.load %arg11[%c0_27, %c0_28] : memref<1x128xf32, #tpu.memory_space<vmem>>, vector<1x128xf32>
    %36 = vector.broadcast %35 : vector<1x128xf32> to vector<8x128xf32>
    %37 = arith.addf %34, %36 : vector<8x128xf32>
    %c0_29 = arith.constant 0 : index
    %c0_30 = arith.constant 0 : index
    %38 = vector.load %arg12[%c0_29, %c0_30] : memref<8x128xf32, #tpu.memory_space<vmem>>, vector<8x128xf32>
    tpu.vector_store %arg12[%c0_29, %c0_30], %37 {strides = array<i32>} : memref<8x128xf32, #tpu.memory_space<vmem>>, vector<8x128xf32>,
    return
  }
  func.func @transform_0(%arg0: i32) -> (i32, i32) {
    %c0_i32 = arith.constant 0 : i32
    %c0_i32_0 = arith.constant 0 : i32
    return %arg0, %c0_i32 : i32, i32
  }
  func.func @transform_1(%arg0: i32) -> (i32, i32) {
    %c0_i32 = arith.constant 0 : i32
    %c0_i32_0 = arith.constant 0 : i32
    %c0_i32_1 = arith.constant 0 : i32
    return %c0_i32, %c0_i32_0 : i32, i32
  }
  func.func @transform_2(%arg0: i32) -> (i32, i32) {
    %c0_i32 = arith.constant 0 : i32
    %c0_i32_0 = arith.constant 0 : i32
    %c0_i32_1 = arith.constant 0 : i32
    return %c0_i32, %c0_i32_0 : i32, i32
  }
  func.func @transform_3(%arg0: i32) -> (i32, i32) {
    %c0_i32 = arith.constant 0 : i32
    %c0_i32_0 = arith.constant 0 : i32
    %c0_i32_1 = arith.constant 0 : i32
    return %c0_i32, %c0_i32_0 : i32, i32
  }
  func.func @transform_4(%arg0: i32) -> (i32, i32) {
    %c0_i32 = arith.constant 0 : i32
    %c0_i32_0 = arith.constant 0 : i32
    %c0_i32_1 = arith.constant 0 : i32
    return %c0_i32, %c0_i32_0 : i32, i32
  }
  func.func @transform_5(%arg0: i32) -> (i32, i32) {
    %c0_i32 = arith.constant 0 : i32
    %c0_i32_0 = arith.constant 0 : i32
    %c0_i32_1 = arith.constant 0 : i32
    return %c0_i32, %c0_i32_0 : i32, i32
  }
  func.func @transform_6(%arg0: i32) -> (i32, i32) {
    %c0_i32 = arith.constant 0 : i32
    %c0_i32_0 = arith.constant 0 : i32
    %c0_i32_1 = arith.constant 0 : i32
    return %c0_i32, %c0_i32_0 : i32, i32
  }
  func.func @transform_7(%arg0: i32) -> (i32, i32) {
    %c0_i32 = arith.constant 0 : i32
    %c0_i32_0 = arith.constant 0 : i32
    %c0_i32_1 = arith.constant 0 : i32
    return %c0_i32, %c0_i32_0 : i32, i32
  }
  func.func @transform_8(%arg0: i32) -> (i32, i32) {
    %c0_i32 = arith.constant 0 : i32
    %c0_i32_0 = arith.constant 0 : i32
    %c0_i32_1 = arith.constant 0 : i32
    return %c0_i32, %c0_i32_0 : i32, i32
  }
  func.func @transform_9(%arg0: i32) -> (i32, i32) {
    %c0_i32 = arith.constant 0 : i32
    %c0_i32_0 = arith.constant 0 : i32
    %c0_i32_1 = arith.constant 0 : i32
    return %c0_i32, %c0_i32_0 : i32, i32
  }
  func.func @transform_10(%arg0: i32) -> (i32, i32) {
    %c0_i32 = arith.constant 0 : i32
    %c0_i32_0 = arith.constant 0 : i32
    %c0_i32_1 = arith.constant 0 : i32
    return %c0_i32, %c0_i32_0 : i32, i32
  }
  func.func @transform_11(%arg0: i32) -> (i32, i32) {
    %c0_i32 = arith.constant 0 : i32
    %c0_i32_0 = arith.constant 0 : i32
    return %arg0, %c0_i32 : i32, i32
  }
}

</mosaic_0001>

<llo_original>
// kernel: neural_network_forward.1
$region0: #{neural_network_forward.1}
  #allocation0 [shape = 'u32[]', space=smem, size = 0x4, offset = 0x4, fixed_abs, tag = 'smem constant byte address 0x4 - core index']
  #allocation1 [shape = 'u32[72,128]{1,0:T(1,128)}', space=vmem, size = 0x9000, scoped, tag = 'internal scratch']
  %s0 = inlined_call_operand.vmem [shape: bf16[8,16], index: 0, kind: input, shape index: {}]
  %s1 = inlined_call_operand.vmem [shape: bf16[16,256], index: 1, kind: input, shape index: {}]
  %s2 = inlined_call_operand.vmem [shape: f32[1,256], index: 2, kind: input, shape index: {}]
  %s3 = inlined_call_operand.vmem [shape: bf16[256,256], index: 3, kind: input, shape index: {}]
  %s4 = inlined_call_operand.vmem [shape: f32[1,256], index: 4, kind: input, shape index: {}]
  %s5 = inlined_call_operand.vmem [shape: bf16[256,128], index: 5, kind: input, shape index: {}]
  %s6 = inlined_call_operand.vmem [shape: f32[1,128], index: 6, kind: input, shape index: {}]
  %s7 = inlined_call_operand.vmem [shape: bf16[128,128], index: 7, kind: input, shape index: {}]
  %s8 = inlined_call_operand.vmem [shape: f32[1,128], index: 8, kind: input, shape index: {}]
  %s9 = inlined_call_operand.vmem [shape: bf16[128,128], index: 9, kind: input, shape index: {}]
  %s10 = inlined_call_operand.vmem [shape: f32[1,128], index: 10, kind: input, shape index: {}]
  %s11 = inlined_call_operand.vmem [shape: f32[8,128], index: 11, kind: output, shape index: {}]
  %s12 = sld [smem:[#allocation0]]
  $region54: #{neural_network_forward.1} parent=0
    _
  %s14 = ssub.s32 1, %s12
  %s15 = scalar_select 0, %s14, %s12
  // Predicated region
  $region2: #{neural_network_forward.1} parent=0 // pred_check
    _
  $region3: #{neural_network_forward.1} parent=0 // pred_check_branch
    %17 = sbr.rel (0) target = $region5
  $region4: #{neural_network_forward.1} parent=0 // pred_region
    _
  $region5: #{neural_network_forward.1} parent=0 // pred_fallthru
    _
  // Predicated region
  $region6: #{neural_network_forward.1} parent=0 // pred_check
    _
  $region7: #{neural_network_forward.1} parent=0 // pred_check_branch
    %19 = sbr.rel (0) target = $region9
  $region8: #{neural_network_forward.1} parent=0 // pred_region
    _
  $region9: #{neural_network_forward.1} parent=0 // pred_fallthru
    _
  // Predicated region
  $region10: #{neural_network_forward.1} parent=0 // pred_check
    _
  $region11: #{neural_network_forward.1} parent=0 // pred_check_branch
    %21 = sbr.rel (0) target = $region13
  $region12: #{neural_network_forward.1} parent=0 // pred_region
    _
  $region13: #{neural_network_forward.1} parent=0 // pred_fallthru
    _
  // Predicated region
  $region14: #{neural_network_forward.1} parent=0 // pred_check
    _
  $region15: #{neural_network_forward.1} parent=0 // pred_check_branch
    %23 = sbr.rel (0) target = $region17
  $region16: #{neural_network_forward.1} parent=0 // pred_region
    _
  $region17: #{neural_network_forward.1} parent=0 // pred_fallthru
    _
  // Predicated region
  $region18: #{neural_network_forward.1} parent=0 // pred_check
    _
  $region19: #{neural_network_forward.1} parent=0 // pred_check_branch
    %25 = sbr.rel (0) target = $region21
  $region20: #{neural_network_forward.1} parent=0 // pred_region
    _
  $region21: #{neural_network_forward.1} parent=0 // pred_fallthru
    _
  // Predicated region
  $region22: #{neural_network_forward.1} parent=0 // pred_check
    _
  $region23: #{neural_network_forward.1} parent=0 // pred_check_branch
    %27 = sbr.rel (0) target = $region25
  $region24: #{neural_network_forward.1} parent=0 // pred_region
    _
  $region25: #{neural_network_forward.1} parent=0 // pred_fallthru
    _
  // Predicated region
  $region26: #{neural_network_forward.1} parent=0 // pred_check
    _
  $region27: #{neural_network_forward.1} parent=0 // pred_check_branch
    %29 = sbr.rel (0) target = $region29
  $region28: #{neural_network_forward.1} parent=0 // pred_region
    _
  $region29: #{neural_network_forward.1} parent=0 // pred_fallthru
    _
  // Predicated region
  $region30: #{neural_network_forward.1} parent=0 // pred_check
    _
  $region31: #{neural_network_forward.1} parent=0 // pred_check_branch
    %31 = sbr.rel (0) target = $region33
  $region32: #{neural_network_forward.1} parent=0 // pred_region
    _
  $region33: #{neural_network_forward.1} parent=0 // pred_fallthru
    _
  // Predicated region
  $region34: #{neural_network_forward.1} parent=0 // pred_check
    _
  $region35: #{neural_network_forward.1} parent=0 // pred_check_branch
    %33 = sbr.rel (0) target = $region37
  $region36: #{neural_network_forward.1} parent=0 // pred_region
    _
  $region37: #{neural_network_forward.1} parent=0 // pred_fallthru
    _
  // Predicated region
  $region38: #{neural_network_forward.1} parent=0 // pred_check
    _
  $region39: #{neural_network_forward.1} parent=0 // pred_check_branch
    %35 = sbr.rel (0) target = $region41
  $region40: #{neural_network_forward.1} parent=0 // pred_region
    _
  $region41: #{neural_network_forward.1} parent=0 // pred_fallthru
    _
  // Predicated region
  $region42: #{neural_network_forward.1} parent=0 // pred_check
    _
  $region43: #{neural_network_forward.1} parent=0 // pred_check_branch
    %37 = sbr.rel (0) target = $region45
  $region44: #{neural_network_forward.1} parent=0 // pred_region
    _
  $region45: #{neural_network_forward.1} parent=0 // pred_fallthru
    _
  %v39 = vld [vmem:[%s0] sm:$0xf]
  %v40 = vld [vmem:[%s1] sm:$0xff]
  %v41 = vld [vmem:[%s1 + $0x8] sm:$0xff]
  %v42 = vld [vmem:[%s2] sm:$0x3]
  %v44 = vperm.slane %v42, 0
  %v45 = vperm.slane %v42, 1
  %v50 = vunpack.c.l.b16 %v40
  %v51 = vunpack.c.h.b16 %v40
  %v52 = vunpack.c.l.b16 %v41
  %v53 = vunpack.c.h.b16 %v41
  %v54 = vpack.c.b16 %v52, %v50
  %v55 = vpack.c.b16 %v53, %v51
  %vm58 = vcmask 130048
  %v60 = vsel %vm58, %v39, 0
  %62 = vmatpush.bf16.msra.mxu0 0
  %63 = vmatpush.bf16.msra.mxu0 0
  %64 = vmatpush.bf16.msra.mxu0 0
  %65 = vmatpush.bf16.msra.mxu0 0
  %66 = vmatpush.bf16.msra.mxu0 0
  %67 = vmatpush.bf16.msra.mxu0 0
  %68 = vmatpush.bf16.msra.mxu0 0
  %69 = vmatpush.bf16.msra.mxu0 %v54
  %70 = vmatmul.bf16.gmra.mxu0 %v60
  %v71 = vpop.f32.mrf.mxu0
  %v72 = vadd.f32 %v44, %v71
  %v73 = vpop.f32.mrf.mxu0
  %74 = vdwg.mxu0
  %75 = vmatpush.bf16.msra.mxu0 0
  %76 = vmatpush.bf16.msra.mxu0 0
  %77 = vmatpush.bf16.msra.mxu0 0
  %78 = vmatpush.bf16.msra.mxu0 0
  %79 = vmatpush.bf16.msra.mxu0 0
  %80 = vmatpush.bf16.msra.mxu0 0
  %81 = vmatpush.bf16.msra.mxu0 0
  %82 = vmatpush.bf16.msra.mxu0 %v55
  %83 = vmatmul.bf16.gmra.mxu0 %v60
  %v84 = vpop.f32.mrf.mxu0
  %v85 = vadd.f32 %v45, %v84
  %v86 = vpop.f32.mrf.mxu0
  %87 = vdwg.mxu0
  %v88 = vmax.f32 %v72, 0.0
  %v89 = vmax.f32 %v85, 0.0
  %v90 = vpack.c.bf16 %v88, %v88
  %v91 = vpack.c.bf16 %v89, %v89
  %v92 = vld [vmem:[%s3] sm:$0xff]
  %v93 = vld [vmem:[%s3 + $0x8] sm:$0xff]
  %v94 = vld [vmem:[%s3 + $0x10] sm:$0xff]
  %v95 = vld [vmem:[%s3 + $0x18] sm:$0xff]
  %v96 = vld [vmem:[%s3 + $0x20] sm:$0xff]
  %v97 = vld [vmem:[%s3 + $0x28] sm:$0xff]
  %v98 = vld [vmem:[%s3 + $0x30] sm:$0xff]
  %v99 = vld [vmem:[%s3 + $0x38] sm:$0xff]
  %v100 = vld [vmem:[%s3 + $0x40] sm:$0xff]
  %v101 = vld [vmem:[%s3 + $0x48] sm:$0xff]
  %v102 = vld [vmem:[%s3 + $0x50] sm:$0xff]
  %v103 = vld [vmem:[%s3 + $0x58] sm:$0xff]
  %v104 = vld [vmem:[%s3 + $0x60] sm:$0xff]
  %v105 = vld [vmem:[%s3 + $0x68] sm:$0xff]
  %v106 = vld [vmem:[%s3 + $0x70] sm:$0xff]
  %v107 = vld [vmem:[%s3 + $0x78] sm:$0xff]
  %v108 = vld [vmem:[%s3 + $0x80] sm:$0xff]
  %v109 = vld [vmem:[%s3 + $0x88] sm:$0xff]
  %v110 = vld [vmem:[%s3 + $0x90] sm:$0xff]
  %v111 = vld [vmem:[%s3 + $0x98] sm:$0xff]
  %v112 = vld [vmem:[%s3 + $0xa0] sm:$0xff]
  %v113 = vld [vmem:[%s3 + $0xa8] sm:$0xff]
  %v114 = vld [vmem:[%s3 + $0xb0] sm:$0xff]
  %v115 = vld [vmem:[%s3 + $0xb8] sm:$0xff]
  %v116 = vld [vmem:[%s3 + $0xc0] sm:$0xff]
  %v117 = vld [vmem:[%s3 + $0xc8] sm:$0xff]
  %v118 = vld [vmem:[%s3 + $0xd0] sm:$0xff]
  %v119 = vld [vmem:[%s3 + $0xd8] sm:$0xff]
  %v120 = vld [vmem:[%s3 + $0xe0] sm:$0xff]
  %v121 = vld [vmem:[%s3 + $0xe8] sm:$0xff]
  %v122 = vld [vmem:[%s3 + $0xf0] sm:$0xff]
  %v123 = vld [vmem:[%s3 + $0xf8] sm:$0xff]
  %v124 = vld [vmem:[%s4] sm:$0x3]
  %v126 = vperm.slane %v124, 0
  %v127 = vperm.slane %v124, 1
  %v162 = vunpack.c.l.b16 %v92
  %v163 = vunpack.c.h.b16 %v92
  %v164 = vunpack.c.l.b16 %v93
  %v165 = vunpack.c.h.b16 %v93
  %v166 = vunpack.c.l.b16 %v94
  %v167 = vunpack.c.h.b16 %v94
  %v168 = vunpack.c.l.b16 %v95
  %v169 = vunpack.c.h.b16 %v95
  %v170 = vunpack.c.l.b16 %v96
  %v171 = vunpack.c.h.b16 %v96
  %v172 = vunpack.c.l.b16 %v97
  %v173 = vunpack.c.h.b16 %v97
  %v174 = vunpack.c.l.b16 %v98
  %v175 = vunpack.c.h.b16 %v98
  %v176 = vunpack.c.l.b16 %v99
  %v177 = vunpack.c.h.b16 %v99
  %v178 = vunpack.c.l.b16 %v100
  %v179 = vunpack.c.h.b16 %v100
  %v180 = vunpack.c.l.b16 %v101
  %v181 = vunpack.c.h.b16 %v101
  %v182 = vunpack.c.l.b16 %v102
  %v183 = vunpack.c.h.b16 %v102
  %v184 = vunpack.c.l.b16 %v103
  %v185 = vunpack.c.h.b16 %v103
  %v186 = vunpack.c.l.b16 %v104
  %v187 = vunpack.c.h.b16 %v104
  %v188 = vunpack.c.l.b16 %v105
  %v189 = vunpack.c.h.b16 %v105
  %v190 = vunpack.c.l.b16 %v106
  %v191 = vunpack.c.h.b16 %v106
  %v192 = vunpack.c.l.b16 %v107
  %v193 = vunpack.c.h.b16 %v107
  %v194 = vunpack.c.l.b16 %v108
  %v195 = vunpack.c.h.b16 %v108
  %v196 = vunpack.c.l.b16 %v109
  %v197 = vunpack.c.h.b16 %v109
  %v198 = vunpack.c.l.b16 %v110
  %v199 = vunpack.c.h.b16 %v110
  %v200 = vunpack.c.l.b16 %v111
  %v201 = vunpack.c.h.b16 %v111
  %v202 = vunpack.c.l.b16 %v112
  %v203 = vunpack.c.h.b16 %v112
  %v204 = vunpack.c.l.b16 %v113
  %v205 = vunpack.c.h.b16 %v113
  %v206 = vunpack.c.l.b16 %v114
  %v207 = vunpack.c.h.b16 %v114
  %v208 = vunpack.c.l.b16 %v115
  %v209 = vunpack.c.h.b16 %v115
  %v210 = vunpack.c.l.b16 %v116
  %v211 = vunpack.c.h.b16 %v116
  %v212 = vunpack.c.l.b16 %v117
  %v213 = vunpack.c.h.b16 %v117
  %v214 = vunpack.c.l.b16 %v118
  %v215 = vunpack.c.h.b16 %v118
  %v216 = vunpack.c.l.b16 %v119
  %v217 = vunpack.c.h.b16 %v119
  %v218 = vunpack.c.l.b16 %v120
  %v219 = vunpack.c.h.b16 %v120
  %v220 = vunpack.c.l.b16 %v121
  %v221 = vunpack.c.h.b16 %v121
  %v222 = vunpack.c.l.b16 %v122
  %v223 = vunpack.c.h.b16 %v122
  %v224 = vunpack.c.l.b16 %v123
  %v225 = vunpack.c.h.b16 %v123
  %v226 = vpack.c.b16 %v164, %v162
  %v227 = vpack.c.b16 %v165, %v163
  %v228 = vpack.c.b16 %v168, %v166
  %v229 = vpack.c.b16 %v169, %v167
  %v230 = vpack.c.b16 %v172, %v170
  %v231 = vpack.c.b16 %v173, %v171
  %v232 = vpack.c.b16 %v176, %v174
  %v233 = vpack.c.b16 %v177, %v175
  %v234 = vpack.c.b16 %v180, %v178
  %v235 = vpack.c.b16 %v181, %v179
  %v236 = vpack.c.b16 %v184, %v182
  %v237 = vpack.c.b16 %v185, %v183
  %v238 = vpack.c.b16 %v188, %v186
  %v239 = vpack.c.b16 %v189, %v187
  %v240 = vpack.c.b16 %v192, %v190
  %v241 = vpack.c.b16 %v193, %v191
  %v242 = vpack.c.b16 %v196, %v194
  %v243 = vpack.c.b16 %v197, %v195
  %v244 = vpack.c.b16 %v200, %v198
  %v245 = vpack.c.b16 %v201, %v199
  %v246 = vpack.c.b16 %v204, %v202
  %v247 = vpack.c.b16 %v205, %v203
  %v248 = vpack.c.b16 %v208, %v206
  %v249 = vpack.c.b16 %v209, %v207
  %v250 = vpack.c.b16 %v212, %v210
  %v251 = vpack.c.b16 %v213, %v211
  %v252 = vpack.c.b16 %v216, %v214
  %v253 = vpack.c.b16 %v217, %v215
  %v254 = vpack.c.b16 %v220, %v218
  %v255 = vpack.c.b16 %v221, %v219
  %v256 = vpack.c.b16 %v224, %v222
  %v257 = vpack.c.b16 %v225, %v223
  %290 = vmatpush.bf16.msra.mxu0 %v240
  %291 = vmatpush.bf16.msra.mxu0 %v238
  %292 = vmatpush.bf16.msra.mxu0 %v236
  %293 = vmatpush.bf16.msra.mxu0 %v234
  %294 = vmatpush.bf16.msra.mxu0 %v232
  %295 = vmatpush.bf16.msra.mxu0 %v230
  %296 = vmatpush.bf16.msra.mxu0 %v228
  %297 = vmatpush.bf16.msra.mxu0 %v226
  %298 = vmatmul.bf16.gmra.mxu0 %v90
  %v299 = vpop.f32.mrf.mxu0
  %v300 = vadd.f32 %v126, %v299
  %v301 = vpop.f32.mrf.mxu0
  %302 = vdwg.mxu0
  %303 = vmatpush.bf16.msra.mxu0 %v256
  %304 = vmatpush.bf16.msra.mxu0 %v254
  %305 = vmatpush.bf16.msra.mxu0 %v252
  %306 = vmatpush.bf16.msra.mxu0 %v250
  %307 = vmatpush.bf16.msra.mxu0 %v248
  %308 = vmatpush.bf16.msra.mxu0 %v246
  %309 = vmatpush.bf16.msra.mxu0 %v244
  %310 = vmatpush.bf16.msra.mxu0 %v242
  %311 = vmatmul.bf16.gmra.mxu0 %v91
  %v312 = vpop.f32.mrf.mxu0
  %v313 = vadd.f32 %v300, %v312
  %v314 = vpop.f32.mrf.mxu0
  %315 = vdwg.mxu0
  %316 = vmatpush.bf16.msra.mxu0 %v241
  %317 = vmatpush.bf16.msra.mxu0 %v239
  %318 = vmatpush.bf16.msra.mxu0 %v237
  %319 = vmatpush.bf16.msra.mxu0 %v235
  %320 = vmatpush.bf16.msra.mxu0 %v233
  %321 = vmatpush.bf16.msra.mxu0 %v231
  %322 = vmatpush.bf16.msra.mxu0 %v229
  %323 = vmatpush.bf16.msra.mxu0 %v227
  %324 = vmatmul.bf16.gmra.mxu0 %v90
  %v325 = vpop.f32.mrf.mxu0
  %v326 = vadd.f32 %v127, %v325
  %v327 = vpop.f32.mrf.mxu0
  %328 = vdwg.mxu0
  %329 = vmatpush.bf16.msra.mxu0 %v257
  %330 = vmatpush.bf16.msra.mxu0 %v255
  %331 = vmatpush.bf16.msra.mxu0 %v253
  %332 = vmatpush.bf16.msra.mxu0 %v251
  %333 = vmatpush.bf16.msra.mxu0 %v249
  %334 = vmatpush.bf16.msra.mxu0 %v247
  %335 = vmatpush.bf16.msra.mxu0 %v245
  %336 = vmatpush.bf16.msra.mxu0 %v243
  %337 = vmatmul.bf16.gmra.mxu0 %v91
  %v338 = vpop.f32.mrf.mxu0
  %v339 = vadd.f32 %v326, %v338
  %v340 = vpop.f32.mrf.mxu0
  %341 = vdwg.mxu0
  %v342 = vmax.f32 %v313, 0.0
  %v343 = vmax.f32 %v339, 0.0
  %v344 = vpack.c.bf16 %v342, %v342
  %v345 = vpack.c.bf16 %v343, %v343
  %v346 = vld [vmem:[%s5] sm:$0xf]
  %v347 = vld [vmem:[%s5 + $0x4] sm:$0xf]
  %v348 = vld [vmem:[%s5 + $0x8] sm:$0xf]
  %v349 = vld [vmem:[%s5 + $0xc] sm:$0xf]
  %v350 = vld [vmem:[%s5 + $0x10] sm:$0xf]
  %v351 = vld [vmem:[%s5 + $0x14] sm:$0xf]
  %v352 = vld [vmem:[%s5 + $0x18] sm:$0xf]
  %v353 = vld [vmem:[%s5 + $0x1c] sm:$0xf]
  %v354 = vld [vmem:[%s5 + $0x20] sm:$0xf]
  %v355 = vld [vmem:[%s5 + $0x24] sm:$0xf]
  %v356 = vld [vmem:[%s5 + $0x28] sm:$0xf]
  %v357 = vld [vmem:[%s5 + $0x2c] sm:$0xf]
  %v358 = vld [vmem:[%s5 + $0x30] sm:$0xf]
  %v359 = vld [vmem:[%s5 + $0x34] sm:$0xf]
  %v360 = vld [vmem:[%s5 + $0x38] sm:$0xf]
  %v361 = vld [vmem:[%s5 + $0x3c] sm:$0xf]
  %v362 = vld [vmem:[%s5 + $0x40] sm:$0xf]
  %v363 = vld [vmem:[%s5 + $0x44] sm:$0xf]
  %v364 = vld [vmem:[%s5 + $0x48] sm:$0xf]
  %v365 = vld [vmem:[%s5 + $0x4c] sm:$0xf]
  %v366 = vld [vmem:[%s5 + $0x50] sm:$0xf]
  %v367 = vld [vmem:[%s5 + $0x54] sm:$0xf]
  %v368 = vld [vmem:[%s5 + $0x58] sm:$0xf]
  %v369 = vld [vmem:[%s5 + $0x5c] sm:$0xf]
  %v370 = vld [vmem:[%s5 + $0x60] sm:$0xf]
  %v371 = vld [vmem:[%s5 + $0x64] sm:$0xf]
  %v372 = vld [vmem:[%s5 + $0x68] sm:$0xf]
  %v373 = vld [vmem:[%s5 + $0x6c] sm:$0xf]
  %v374 = vld [vmem:[%s5 + $0x70] sm:$0xf]
  %v375 = vld [vmem:[%s5 + $0x74] sm:$0xf]
  %v376 = vld [vmem:[%s5 + $0x78] sm:$0xf]
  %v377 = vld [vmem:[%s5 + $0x7c] sm:$0xf]
  %v378 = vld [vmem:[%s6] sm:$0x1]
  %v380 = vperm.slane %v378, 0
  %v414 = vunpack.c.l.b16 %v346
  %v415 = vunpack.c.l.b16 %v347
  %v416 = vunpack.c.l.b16 %v348
  %v417 = vunpack.c.l.b16 %v349
  %v418 = vunpack.c.l.b16 %v350
  %v419 = vunpack.c.l.b16 %v351
  %v420 = vunpack.c.l.b16 %v352
  %v421 = vunpack.c.l.b16 %v353
  %v422 = vunpack.c.l.b16 %v354
  %v423 = vunpack.c.l.b16 %v355
  %v424 = vunpack.c.l.b16 %v356
  %v425 = vunpack.c.l.b16 %v357
  %v426 = vunpack.c.l.b16 %v358
  %v427 = vunpack.c.l.b16 %v359
  %v428 = vunpack.c.l.b16 %v360
  %v429 = vunpack.c.l.b16 %v361
  %v430 = vunpack.c.l.b16 %v362
  %v431 = vunpack.c.l.b16 %v363
  %v432 = vunpack.c.l.b16 %v364
  %v433 = vunpack.c.l.b16 %v365
  %v434 = vunpack.c.l.b16 %v366
  %v435 = vunpack.c.l.b16 %v367
  %v436 = vunpack.c.l.b16 %v368
  %v437 = vunpack.c.l.b16 %v369
  %v438 = vunpack.c.l.b16 %v370
  %v439 = vunpack.c.l.b16 %v371
  %v440 = vunpack.c.l.b16 %v372
  %v441 = vunpack.c.l.b16 %v373
  %v442 = vunpack.c.l.b16 %v374
  %v443 = vunpack.c.l.b16 %v375
  %v444 = vunpack.c.l.b16 %v376
  %v445 = vunpack.c.l.b16 %v377
  %v446 = vpack.c.b16 %v415, %v414
  %v447 = vpack.c.b16 %v417, %v416
  %v448 = vpack.c.b16 %v419, %v418
  %v449 = vpack.c.b16 %v421, %v420
  %v450 = vpack.c.b16 %v423, %v422
  %v451 = vpack.c.b16 %v425, %v424
  %v452 = vpack.c.b16 %v427, %v426
  %v453 = vpack.c.b16 %v429, %v428
  %v454 = vpack.c.b16 %v431, %v430
  %v455 = vpack.c.b16 %v433, %v432
  %v456 = vpack.c.b16 %v435, %v434
  %v457 = vpack.c.b16 %v437, %v436
  %v458 = vpack.c.b16 %v439, %v438
  %v459 = vpack.c.b16 %v441, %v440
  %v460 = vpack.c.b16 %v443, %v442
  %v461 = vpack.c.b16 %v445, %v444
  %478 = vmatpush.bf16.msra.mxu0 %v453
  %479 = vmatpush.bf16.msra.mxu0 %v452
  %480 = vmatpush.bf16.msra.mxu0 %v451
  %481 = vmatpush.bf16.msra.mxu0 %v450
  %482 = vmatpush.bf16.msra.mxu0 %v449
  %483 = vmatpush.bf16.msra.mxu0 %v448
  %484 = vmatpush.bf16.msra.mxu0 %v447
  %485 = vmatpush.bf16.msra.mxu0 %v446
  %486 = vmatmul.bf16.gmra.mxu0 %v344
  %v487 = vpop.f32.mrf.mxu0
  %v488 = vadd.f32 %v380, %v487
  %v489 = vpop.f32.mrf.mxu0
  %490 = vdwg.mxu0
  %491 = vmatpush.bf16.msra.mxu0 %v461
  %492 = vmatpush.bf16.msra.mxu0 %v460
  %493 = vmatpush.bf16.msra.mxu0 %v459
  %494 = vmatpush.bf16.msra.mxu0 %v458
  %495 = vmatpush.bf16.msra.mxu0 %v457
  %496 = vmatpush.bf16.msra.mxu0 %v456
  %497 = vmatpush.bf16.msra.mxu0 %v455
  %498 = vmatpush.bf16.msra.mxu0 %v454
  %499 = vmatmul.bf16.gmra.mxu0 %v345
  %v500 = vpop.f32.mrf.mxu0
  %v501 = vadd.f32 %v488, %v500
  %v502 = vpop.f32.mrf.mxu0
  %503 = vdwg.mxu0
  %v504 = vmax.f32 %v501, 0.0
  %v505 = vpack.c.bf16 %v504, %v504
  %v506 = vld [vmem:[%s7] sm:$0xf]
  %v507 = vld [vmem:[%s7 + $0x4] sm:$0xf]
  %v508 = vld [vmem:[%s7 + $0x8] sm:$0xf]
  %v509 = vld [vmem:[%s7 + $0xc] sm:$0xf]
  %v510 = vld [vmem:[%s7 + $0x10] sm:$0xf]
  %v511 = vld [vmem:[%s7 + $0x14] sm:$0xf]
  %v512 = vld [vmem:[%s7 + $0x18] sm:$0xf]
  %v513 = vld [vmem:[%s7 + $0x1c] sm:$0xf]
  %v514 = vld [vmem:[%s7 + $0x20] sm:$0xf]
  %v515 = vld [vmem:[%s7 + $0x24] sm:$0xf]
  %v516 = vld [vmem:[%s7 + $0x28] sm:$0xf]
  %v517 = vld [vmem:[%s7 + $0x2c] sm:$0xf]
  %v518 = vld [vmem:[%s7 + $0x30] sm:$0xf]
  %v519 = vld [vmem:[%s7 + $0x34] sm:$0xf]
  %v520 = vld [vmem:[%s7 + $0x38] sm:$0xf]
  %v521 = vld [vmem:[%s7 + $0x3c] sm:$0xf]
  %v522 = vld [vmem:[%s8] sm:$0x1]
  %v524 = vperm.slane %v522, 0
  %v542 = vunpack.c.l.b16 %v506
  %v543 = vunpack.c.l.b16 %v507
  %v544 = vunpack.c.l.b16 %v508
  %v545 = vunpack.c.l.b16 %v509
  %v546 = vunpack.c.l.b16 %v510
  %v547 = vunpack.c.l.b16 %v511
  %v548 = vunpack.c.l.b16 %v512
  %v549 = vunpack.c.l.b16 %v513
  %v550 = vunpack.c.l.b16 %v514
  %v551 = vunpack.c.l.b16 %v515
  %v552 = vunpack.c.l.b16 %v516
  %v553 = vunpack.c.l.b16 %v517
  %v554 = vunpack.c.l.b16 %v518
  %v555 = vunpack.c.l.b16 %v519
  %v556 = vunpack.c.l.b16 %v520
  %v557 = vunpack.c.l.b16 %v521
  %v558 = vpack.c.b16 %v543, %v542
  %v559 = vpack.c.b16 %v545, %v544
  %v560 = vpack.c.b16 %v547, %v546
  %v561 = vpack.c.b16 %v549, %v548
  %v562 = vpack.c.b16 %v551, %v550
  %v563 = vpack.c.b16 %v553, %v552
  %v564 = vpack.c.b16 %v555, %v554
  %v565 = vpack.c.b16 %v557, %v556
  %574 = vmatpush.bf16.msra.mxu0 %v565
  %575 = vmatpush.bf16.msra.mxu0 %v564
  %576 = vmatpush.bf16.msra.mxu0 %v563
  %577 = vmatpush.bf16.msra.mxu0 %v562
  %578 = vmatpush.bf16.msra.mxu0 %v561
  %579 = vmatpush.bf16.msra.mxu0 %v560
  %580 = vmatpush.bf16.msra.mxu0 %v559
  %581 = vmatpush.bf16.msra.mxu0 %v558
  %582 = vmatmul.bf16.gmra.mxu0 %v505
  %v583 = vpop.f32.mrf.mxu0
  %v584 = vadd.f32 %v524, %v583
  %v585 = vpop.f32.mrf.mxu0
  %586 = vdwg.mxu0
  %v587 = vmax.f32 %v584, 0.0
  %v588 = vpack.c.bf16 %v587, %v587
  %v589 = vld [vmem:[%s9] sm:$0xf]
  %v590 = vld [vmem:[%s9 + $0x4] sm:$0xf]
  %v591 = vld [vmem:[%s9 + $0x8] sm:$0xf]
  %v592 = vld [vmem:[%s9 + $0xc] sm:$0xf]
  %v593 = vld [vmem:[%s9 + $0x10] sm:$0xf]
  %v594 = vld [vmem:[%s9 + $0x14] sm:$0xf]
  %v595 = vld [vmem:[%s9 + $0x18] sm:$0xf]
  %v596 = vld [vmem:[%s9 + $0x1c] sm:$0xf]
  %v597 = vld [vmem:[%s9 + $0x20] sm:$0xf]
  %v598 = vld [vmem:[%s9 + $0x24] sm:$0xf]
  %v599 = vld [vmem:[%s9 + $0x28] sm:$0xf]
  %v600 = vld [vmem:[%s9 + $0x2c] sm:$0xf]
  %v601 = vld [vmem:[%s9 + $0x30] sm:$0xf]
  %v602 = vld [vmem:[%s9 + $0x34] sm:$0xf]
  %v603 = vld [vmem:[%s9 + $0x38] sm:$0xf]
  %v604 = vld [vmem:[%s9 + $0x3c] sm:$0xf]
  %v605 = vld [vmem:[%s10] sm:$0x1]
  %v607 = vperm.slane %v605, 0
  %v625 = vunpack.c.l.b16 %v589
  %v626 = vunpack.c.l.b16 %v590
  %v627 = vunpack.c.l.b16 %v591
  %v628 = vunpack.c.l.b16 %v592
  %v629 = vunpack.c.l.b16 %v593
  %v630 = vunpack.c.l.b16 %v594
  %v631 = vunpack.c.l.b16 %v595
  %v632 = vunpack.c.l.b16 %v596
  %v633 = vunpack.c.l.b16 %v597
  %v634 = vunpack.c.l.b16 %v598
  %v635 = vunpack.c.l.b16 %v599
  %v636 = vunpack.c.l.b16 %v600
  %v637 = vunpack.c.l.b16 %v601
  %v638 = vunpack.c.l.b16 %v602
  %v639 = vunpack.c.l.b16 %v603
  %v640 = vunpack.c.l.b16 %v604
  %v641 = vpack.c.b16 %v626, %v625
  %v642 = vpack.c.b16 %v628, %v627
  %v643 = vpack.c.b16 %v630, %v629
  %v644 = vpack.c.b16 %v632, %v631
  %v645 = vpack.c.b16 %v634, %v633
  %v646 = vpack.c.b16 %v636, %v635
  %v647 = vpack.c.b16 %v638, %v637
  %v648 = vpack.c.b16 %v640, %v639
  %657 = vmatpush.bf16.msra.mxu0 %v648
  %658 = vmatpush.bf16.msra.mxu0 %v647
  %659 = vmatpush.bf16.msra.mxu0 %v646
  %660 = vmatpush.bf16.msra.mxu0 %v645
  %661 = vmatpush.bf16.msra.mxu0 %v644
  %662 = vmatpush.bf16.msra.mxu0 %v643
  %663 = vmatpush.bf16.msra.mxu0 %v642
  %664 = vmatpush.bf16.msra.mxu0 %v641
  %665 = vmatmul.bf16.gmra.mxu0 %v588
  %v666 = vpop.f32.mrf.mxu0
  %v667 = vadd.f32 %v607, %v666
  %v668 = vpop.f32.mrf.mxu0
  %669 = vdwg.mxu0
  %670 = vst [vmem:[%s11] sm:$0xff] %v667
  // Predicated region
  $region46: #{neural_network_forward.1} parent=0 // pred_check
    _
  $region47: #{neural_network_forward.1} parent=0 // pred_check_branch
    %672 = sbr.rel (0) target = $region49
  $region48: #{neural_network_forward.1} parent=0 // pred_region
    _
  $region49: #{neural_network_forward.1} parent=0 // pred_fallthru
    _
  // Predicated region
  $region50: #{neural_network_forward.1} parent=0 // pred_check
    _
  $region51: #{neural_network_forward.1} parent=0 // pred_check_branch
    %674 = sbr.rel (0) target = $region53
  $region52: #{neural_network_forward.1} parent=0 // pred_region
    _
  $region53: #{neural_network_forward.1} parent=0 // pred_fallthru
    _

</llo_original>
